<compile_context>
chip_gen: v6e
topology: v6e:2x2x1
jax: 0.10.0
libtpu: 0.0.40
codegen_flags: <defaults>
</compile_context>

<pallas_src>
import jax
import jax.numpy as jnp
from jax.experimental import pallas as pl
from jax.experimental.pallas import tpu as pltpu


def _round_up(x, m):
    return ((x + m - 1) // m) * m


def _rec_kernel(u_ref, n_ref,
                w1u_ref, b1u_ref, w2u_ref, b2u_ref,
                w1n_ref, b1n_ref, w2n_ref, b2n_ref,
                wou_ref, won_ref, bo_ref, o_ref):
    # u_ref: (tm, user_dim) f32, n_ref: (tm, news_dim) f32.
    # Weights bf16 (in, out) layout, biases f32 (1, out), bo (1,1) f32 in SMEM.

    # ---- User tower -------------------------------------------------------
    u = u_ref[...].astype(jnp.bfloat16)                          # in-kernel cast
    h1u = jnp.dot(u, w1u_ref[...], preferred_element_type=jnp.float32)
    h1u = jnp.maximum(h1u + b1u_ref[...], 0.0)                   # (tm, h1) f32
    h2u = jnp.dot(h1u.astype(jnp.bfloat16), w2u_ref[...],
                  preferred_element_type=jnp.float32)
    h2u = jnp.maximum(h2u + b2u_ref[...], 0.0)                   # (tm, h2) f32
    # Output layer contribution as VPU multiply + lane (XLU) reduction.
    score = jnp.sum(h2u * wou_ref[...], axis=-1, keepdims=True)  # (tm, 1)

    # ---- News tower -------------------------------------------------------
    n = n_ref[...].astype(jnp.bfloat16)
    h1n = jnp.dot(n, w1n_ref[...], preferred_element_type=jnp.float32)
    h1n = jnp.maximum(h1n + b1n_ref[...], 0.0)
    h2n = jnp.dot(h1n.astype(jnp.bfloat16), w2n_ref[...],
                  preferred_element_type=jnp.float32)
    h2n = jnp.maximum(h2n + b2n_ref[...], 0.0)
    score = score + jnp.sum(h2n * won_ref[...], axis=-1, keepdims=True)

    # Minimal-traffic store: 4 bytes per batch row.
    o_ref[...] = (score + bo_ref[0, 0]).astype(o_ref.dtype)


def recommendation_forward(user_emb, news_emb, params, *, block_batch=4096):
    """params: dict from init_params()[0] (bf16 weights, f32 biases)."""
    B, user_dim = user_emb.shape
    _, news_dim = news_emb.shape
    h1 = params["w1u"].shape[1]
    h2 = params["w2u"].shape[1]

    # Batch tile: big enough to amortize per-step overhead, but keep >= 2
    # grid blocks for mid-size batches so both v7x TensorCores get work.
    if B > 512:
        tm = min(block_batch, _round_up(pl.cdiv(B, 2), 256))
    else:
        tm = _round_up(max(B, 1), 8)
    grid = (pl.cdiv(B, tm),)

    weight_bytes = (2 * (user_dim * h1 + news_dim * h1 + 2 * h1 * h2)   # bf16
                    + 4 * (2 * h1 + 2 * h2 + 2 * h2 + 1))               # f32 biases
    cost = pl.CostEstimate(
        flops=2 * B * (user_dim * h1 + h1 * h2 + news_dim * h1 + h1 * h2 + 2 * h2),
        transcendentals=0,
        bytes_accessed=B * (user_dim + news_dim) * 4 + B * 4 + weight_bytes,
    )

    const = lambda i: (0, 0)   # weights/biases stay VMEM-resident across steps

    out = pl.pallas_call(
        _rec_kernel,
        out_shape=jax.ShapeDtypeStruct((B, 1), jnp.float32),
        grid=grid,
        in_specs=[
            # batch-tiled raw f32 embeddings (cast to bf16 inside the kernel)
            pl.BlockSpec((tm, user_dim), lambda i: (i, 0)),
            pl.BlockSpec((tm, news_dim), lambda i: (i, 0)),
            # user tower weights / biases
            pl.BlockSpec((user_dim, h1), const),
            pl.BlockSpec((1, h1), const),
            pl.BlockSpec((h1, h2), const),
            pl.BlockSpec((1, h2), const),
            # news tower weights / biases
            pl.BlockSpec((news_dim, h1), const),
            pl.BlockSpec((1, h1), const),
            pl.BlockSpec((h1, h2), const),
            pl.BlockSpec((1, h2), const),
            # output layer (split per tower, used on the VPU)
            pl.BlockSpec((1, h2), const),
            pl.BlockSpec((1, h2), const),
            # scalar output bias in SMEM
            pl.BlockSpec((1, 1), const, memory_space=pltpu.MemorySpace.SMEM),
        ],
        out_specs=pl.BlockSpec((tm, 1), lambda i: (i, 0)),
        compiler_params=pltpu.CompilerParams(
            dimension_semantics=("parallel",),
            vmem_limit_bytes=48 * 1024 * 1024,
        ),
        cost_estimate=cost,
    )(user_emb, news_emb,
      params["w1u"], params["b1u"], params["w2u"], params["b2u"],
      params["w1n"], params["b1n"], params["w2n"], params["b2n"],
      params["wou_row"], params["won_row"], params["bo"])

    return out


def init_params(key, user_dim, news_dim, h1=256, h2=128):
    """Returns (kernel_params, raw_f32_params_for_reference).

    Weights are stored as (in_features, out_features), i.e. the transpose of
    PyTorch nn.Linear.weight, so y = x @ W + b.  Init matches nn.Linear
    (uniform +/- 1/sqrt(fan_in)).
    """
    ks = jax.random.split(key, 10)

    def lin(kw, kb, fan_in, fan_out):
        bound = 1.0 / (float(fan_in) ** 0.5)
        w = jax.random.uniform(kw, (fan_in, fan_out), jnp.float32, -bound, bound)
        b = jax.random.uniform(kb, (1, fan_out), jnp.float32, -bound, bound)
        return w, b

    w1u, b1u = lin(ks[0], ks[1], user_dim, h1)
    w2u, b2u = lin(ks[2], ks[3], h1, h2)
    w1n, b1n = lin(ks[4], ks[5], news_dim, h1)
    w2n, b2n = lin(ks[6], ks[7], h1, h2)
    wo, bo = lin(ks[8], ks[9], 2 * h2, 1)            # wo: (2*h2, 1), bo: (1, 1)

    kernel_params = {
        "w1u": w1u.astype(jnp.bfloat16), "b1u": b1u,
        "w2u": w2u.astype(jnp.bfloat16), "b2u": b2u,
        "w1n": w1n.astype(jnp.bfloat16), "b1n": b1n,
        "w2n": w2n.astype(jnp.bfloat16), "b2n": b2n,
        "wou_row": wo[:h2].T,            # (1, h2) f32, user half of output layer
        "won_row": wo[h2:].T,            # (1, h2) f32, news half of output layer
        "bo": bo,                        # (1, 1) f32 (SMEM scalar)
    }
    raw = {"w1u": w1u, "b1u": b1u, "w2u": w2u, "b2u": b2u,
           "w1n": w1n, "b1n": b1n, "w2n": w2n, "b2n": b2n,
           "wo": wo, "bo": bo}
    return kernel_params, raw


def reference_forward(user_emb, news_emb, raw):
    """Two-tower reference mirroring the kernel's bf16-operand / f32-accum math."""
    # TODO(synk): bf16 matmul operands differ from a pure-f32 PyTorch model by
    # ~1e-2 relative; keep f32 weights here if bit-faithful scoring is required.
    def tower(x, w1, b1, w2, b2):
        h = jnp.dot(x.astype(jnp.bfloat16), w1.astype(jnp.bfloat16),
                    preferred_element_type=jnp.float32)
        h = jnp.maximum(h + b1, 0.0)
        o = jnp.dot(h.astype(jnp.bfloat16), w2.astype(jnp.bfloat16),
                    preferred_element_type=jnp.float32)
        return jnp.maximum(o + b2, 0.0)

    uo = tower(user_emb, raw["w1u"], raw["b1u"], raw["w2u"], raw["b2u"])
    no = tower(news_emb, raw["w1n"], raw["b1n"], raw["w2n"], raw["b2n"])
    combined = jnp.concatenate([uo, no], axis=1)
    return jnp.sum(combined * raw["wo"].T, axis=-1, keepdims=True) + raw["bo"]


if __name__ == "__main__":
    key = jax.random.PRNGKey(0)
    k_params, k_user, k_news = jax.random.split(key, 3)

    USER_DIM, NEWS_DIM = 64, 32
    BATCH = 8

    kernel_params, raw = init_params(k_params, USER_DIM, NEWS_DIM)
    user_emb = jax.random.normal(k_user, (BATCH, USER_DIM), jnp.float32)
    news_emb = jax.random.normal(k_news, (BATCH, NEWS_DIM), jnp.float32)

    out = recommendation_forward(user_emb, news_emb, kernel_params)
    out = jax.block_until_ready(out)

    ref = reference_forward(user_emb, news_emb, raw)
    assert out.shape == (BATCH, 1), out.shape
    assert jnp.allclose(out, ref, atol=1e-2, rtol=1e-2), "mismatch vs JAX reference"

    print("KERNEL_OK")
</pallas_src>

<mosaic_0001>
module attributes {stable_mosaic.version = 11 : i64} {
  func.func @_rec_kernel(%arg0: i32, %arg1: memref<8x64xf32, #tpu.memory_space<vmem>>, %arg2: memref<8x32xf32, #tpu.memory_space<vmem>>, %arg3: memref<64x256xbf16, #tpu.memory_space<vmem>>, %arg4: memref<1x256xf32, #tpu.memory_space<vmem>>, %arg5: memref<256x128xbf16, #tpu.memory_space<vmem>>, %arg6: memref<1x128xf32, #tpu.memory_space<vmem>>, %arg7: memref<32x256xbf16, #tpu.memory_space<vmem>>, %arg8: memref<1x256xf32, #tpu.memory_space<vmem>>, %arg9: memref<256x128xbf16, #tpu.memory_space<vmem>>, %arg10: memref<1x128xf32, #tpu.memory_space<vmem>>, %arg11: memref<1x128xf32, #tpu.memory_space<vmem>>, %arg12: memref<1x128xf32, #tpu.memory_space<vmem>>, %arg13: memref<1x1xf32, #tpu.memory_space<smem>>, %arg14: memref<8x1xf32, #tpu.memory_space<vmem>>) attributes {dimension_semantics = [#tpu.dimension_semantics<parallel>], iteration_bounds = array<i64: 1>, scalar_prefetch = 0 : i64, scratch_operands = 0 : i64, tpu.core_type = #tpu.core_type<tc>, window_params = [{transform_indices = @transform_0, window_bounds = array<i64: 8, 64>}, {transform_indices = @transform_1, window_bounds = array<i64: 8, 32>}, {pipeline_mode = #tpu.pipeline_mode<synchronous>, transform_indices = @transform_2, window_bounds = array<i64: 64, 256>}, {pipeline_mode = #tpu.pipeline_mode<synchronous>, transform_indices = @transform_3, window_bounds = array<i64: 1, 256>}, {pipeline_mode = #tpu.pipeline_mode<synchronous>, transform_indices = @transform_4, window_bounds = array<i64: 256, 128>}, {pipeline_mode = #tpu.pipeline_mode<synchronous>, transform_indices = @transform_5, window_bounds = array<i64: 1, 128>}, {pipeline_mode = #tpu.pipeline_mode<synchronous>, transform_indices = @transform_6, window_bounds = array<i64: 32, 256>}, {pipeline_mode = #tpu.pipeline_mode<synchronous>, transform_indices = @transform_7, window_bounds = array<i64: 1, 256>}, {pipeline_mode = #tpu.pipeline_mode<synchronous>, transform_indices = @transform_8, window_bounds = array<i64: 256, 128>}, {pipeline_mode = #tpu.pipeline_mode<synchronous>, transform_indices = @transform_9, window_bounds = array<i64: 1, 128>}, {pipeline_mode = #tpu.pipeline_mode<synchronous>, transform_indices = @transform_10, window_bounds = array<i64: 1, 128>}, {pipeline_mode = #tpu.pipeline_mode<synchronous>, transform_indices = @transform_11, window_bounds = array<i64: 1, 128>}, {transform_indices = @transform_12, window_bounds = array<i64: 1, 1>}, {transform_indices = @transform_13, window_bounds = array<i64: 8, 1>}]} {
    %c0 = arith.constant 0 : index
    %c0_0 = arith.constant 0 : index
    %0 = vector.load %arg1[%c0, %c0_0] : memref<8x64xf32, #tpu.memory_space<vmem>>, vector<8x64xf32>
    %1 = arith.truncf %0 : vector<8x64xf32> to vector<8x64xbf16>
    %c0_1 = arith.constant 0 : index
    %c0_2 = arith.constant 0 : index
    %2 = vector.load %arg3[%c0_1, %c0_2] : memref<64x256xbf16, #tpu.memory_space<vmem>>, vector<64x256xbf16>
    %cst = arith.constant dense<0.000000e+00> : vector<8x256xf32>
    %3 = tpu.matmul %1, %2, %cst {dimension_numbers = #tpu.dot_dimension_numbers<[1], [0], [0], [1], [0, 0, 1, 1], [], []>} : vector<8x64xbf16>, vector<64x256xbf16>, vector<8x256xf32> -> vector<8x256xf32>
    %c0_3 = arith.constant 0 : index
    %c0_4 = arith.constant 0 : index
    %4 = vector.load %arg4[%c0_3, %c0_4] : memref<1x256xf32, #tpu.memory_space<vmem>>, vector<1x256xf32>
    %5 = vector.broadcast %4 : vector<1x256xf32> to vector<8x256xf32>
    %6 = arith.addf %3, %5 : vector<8x256xf32>
    %cst_5 = arith.constant 0.000000e+00 : f32
    %7 = vector.broadcast %cst_5 : f32 to vector<8x256xf32>
    %8 = arith.maximumf %6, %7 : vector<8x256xf32>
    %9 = arith.truncf %8 : vector<8x256xf32> to vector<8x256xbf16>
    %c0_6 = arith.constant 0 : index
    %c0_7 = arith.constant 0 : index
    %10 = vector.load %arg5[%c0_6, %c0_7] : memref<256x128xbf16, #tpu.memory_space<vmem>>, vector<256x128xbf16>
    %cst_8 = arith.constant dense<0.000000e+00> : vector<8x128xf32>
    %11 = tpu.matmul %9, %10, %cst_8 {dimension_numbers = #tpu.dot_dimension_numbers<[1], [0], [0], [1], [0, 0, 1, 1], [], []>} : vector<8x256xbf16>, vector<256x128xbf16>, vector<8x128xf32> -> vector<8x128xf32>
    %c0_9 = arith.constant 0 : index
    %c0_10 = arith.constant 0 : index
    %12 = vector.load %arg6[%c0_9, %c0_10] : memref<1x128xf32, #tpu.memory_space<vmem>>, vector<1x128xf32>
    %13 = vector.broadcast %12 : vector<1x128xf32> to vector<8x128xf32>
    %14 = arith.addf %11, %13 : vector<8x128xf32>
    %cst_11 = arith.constant 0.000000e+00 : f32
    %15 = vector.broadcast %cst_11 : f32 to vector<8x128xf32>
    %16 = arith.maximumf %14, %15 : vector<8x128xf32>
    %c0_12 = arith.constant 0 : index
    %c0_13 = arith.constant 0 : index
    %17 = vector.load %arg11[%c0_12, %c0_13] : memref<1x128xf32, #tpu.memory_space<vmem>>, vector<1x128xf32>
    %18 = vector.broadcast %17 : vector<1x128xf32> to vector<8x128xf32>
    %19 = arith.mulf %16, %18 : vector<8x128xf32>
    %cst_14 = arith.constant dense<0.000000e+00> : vector<8xf32>
    %20 = vector.multi_reduction <add>, %19, %cst_14 [1] : vector<8x128xf32> to vector<8xf32>
    %21 = vector.shape_cast %20 : vector<8xf32> to vector<8x1xf32>
    %c0_15 = arith.constant 0 : index
    %c0_16 = arith.constant 0 : index
    %22 = vector.load %arg2[%c0_15, %c0_16] : memref<8x32xf32, #tpu.memory_space<vmem>>, vector<8x32xf32>
    %23 = arith.truncf %22 : vector<8x32xf32> to vector<8x32xbf16>
    %c0_17 = arith.constant 0 : index
    %c0_18 = arith.constant 0 : index
    %24 = vector.load %arg7[%c0_17, %c0_18] : memref<32x256xbf16, #tpu.memory_space<vmem>>, vector<32x256xbf16>
    %cst_19 = arith.constant dense<0.000000e+00> : vector<8x256xf32>
    %25 = tpu.matmul %23, %24, %cst_19 {dimension_numbers = #tpu.dot_dimension_numbers<[1], [0], [0], [1], [0, 0, 1, 1], [], []>} : vector<8x32xbf16>, vector<32x256xbf16>, vector<8x256xf32> -> vector<8x256xf32>
    %c0_20 = arith.constant 0 : index
    %c0_21 = arith.constant 0 : index
    %26 = vector.load %arg8[%c0_20, %c0_21] : memref<1x256xf32, #tpu.memory_space<vmem>>, vector<1x256xf32>
    %27 = vector.broadcast %26 : vector<1x256xf32> to vector<8x256xf32>
    %28 = arith.addf %25, %27 : vector<8x256xf32>
    %cst_22 = arith.constant 0.000000e+00 : f32
    %29 = vector.broadcast %cst_22 : f32 to vector<8x256xf32>
    %30 = arith.maximumf %28, %29 : vector<8x256xf32>
    %31 = arith.truncf %30 : vector<8x256xf32> to vector<8x256xbf16>
    %c0_23 = arith.constant 0 : index
    %c0_24 = arith.constant 0 : index
    %32 = vector.load %arg9[%c0_23, %c0_24] : memref<256x128xbf16, #tpu.memory_space<vmem>>, vector<256x128xbf16>
    %cst_25 = arith.constant dense<0.000000e+00> : vector<8x128xf32>
    %33 = tpu.matmul %31, %32, %cst_25 {dimension_numbers = #tpu.dot_dimension_numbers<[1], [0], [0], [1], [0, 0, 1, 1], [], []>} : vector<8x256xbf16>, vector<256x128xbf16>, vector<8x128xf32> -> vector<8x128xf32>
    %c0_26 = arith.constant 0 : index
    %c0_27 = arith.constant 0 : index
    %34 = vector.load %arg10[%c0_26, %c0_27] : memref<1x128xf32, #tpu.memory_space<vmem>>, vector<1x128xf32>
    %35 = vector.broadcast %34 : vector<1x128xf32> to vector<8x128xf32>
    %36 = arith.addf %33, %35 : vector<8x128xf32>
    %cst_28 = arith.constant 0.000000e+00 : f32
    %37 = vector.broadcast %cst_28 : f32 to vector<8x128xf32>
    %38 = arith.maximumf %36, %37 : vector<8x128xf32>
    %c0_29 = arith.constant 0 : index
    %c0_30 = arith.constant 0 : index
    %39 = vector.load %arg12[%c0_29, %c0_30] : memref<1x128xf32, #tpu.memory_space<vmem>>, vector<1x128xf32>
    %40 = vector.broadcast %39 : vector<1x128xf32> to vector<8x128xf32>
    %41 = arith.mulf %38, %40 : vector<8x128xf32>
    %cst_31 = arith.constant dense<0.000000e+00> : vector<8xf32>
    %42 = vector.multi_reduction <add>, %41, %cst_31 [1] : vector<8x128xf32> to vector<8xf32>
    %43 = vector.shape_cast %42 : vector<8xf32> to vector<8x1xf32>
    %44 = arith.addf %21, %43 : vector<8x1xf32>
    %c0_32 = arith.constant 0 : index
    %c0_33 = arith.constant 0 : index
    %45 = memref.load %arg13[%c0_32, %c0_33] : memref<1x1xf32, #tpu.memory_space<smem>>
    %46 = vector.broadcast %45 : f32 to vector<8x1xf32>
    %47 = arith.addf %44, %46 : vector<8x1xf32>
    %c0_34 = arith.constant 0 : index
    %c0_35 = arith.constant 0 : index
    %48 = vector.load %arg14[%c0_34, %c0_35] : memref<8x1xf32, #tpu.memory_space<vmem>>, vector<8x1xf32>
    tpu.vector_store %arg14[%c0_34, %c0_35], %47 {strides = array<i32>} : memref<8x1xf32, #tpu.memory_space<vmem>>, vector<8x1xf32>,
    return
  }
  func.func @transform_0(%arg0: i32) -> (i32, i32) {
    %c0_i32 = arith.constant 0 : i32
    %c0_i32_0 = arith.constant 0 : i32
    return %arg0, %c0_i32 : i32, i32
  }
  func.func @transform_1(%arg0: i32) -> (i32, i32) {
    %c0_i32 = arith.constant 0 : i32
    %c0_i32_0 = arith.constant 0 : i32
    return %arg0, %c0_i32 : i32, i32
  }
  func.func @transform_2(%arg0: i32) -> (i32, i32) {
    %c0_i32 = arith.constant 0 : i32
    %c0_i32_0 = arith.constant 0 : i32
    %c0_i32_1 = arith.constant 0 : i32
    return %c0_i32, %c0_i32_0 : i32, i32
  }
  func.func @transform_3(%arg0: i32) -> (i32, i32) {
    %c0_i32 = arith.constant 0 : i32
    %c0_i32_0 = arith.constant 0 : i32
    %c0_i32_1 = arith.constant 0 : i32
    return %c0_i32, %c0_i32_0 : i32, i32
  }
  func.func @transform_4(%arg0: i32) -> (i32, i32) {
    %c0_i32 = arith.constant 0 : i32
    %c0_i32_0 = arith.constant 0 : i32
    %c0_i32_1 = arith.constant 0 : i32
    return %c0_i32, %c0_i32_0 : i32, i32
  }
  func.func @transform_5(%arg0: i32) -> (i32, i32) {
    %c0_i32 = arith.constant 0 : i32
    %c0_i32_0 = arith.constant 0 : i32
    %c0_i32_1 = arith.constant 0 : i32
    return %c0_i32, %c0_i32_0 : i32, i32
  }
  func.func @transform_6(%arg0: i32) -> (i32, i32) {
    %c0_i32 = arith.constant 0 : i32
    %c0_i32_0 = arith.constant 0 : i32
    %c0_i32_1 = arith.constant 0 : i32
    return %c0_i32, %c0_i32_0 : i32, i32
  }
  func.func @transform_7(%arg0: i32) -> (i32, i32) {
    %c0_i32 = arith.constant 0 : i32
    %c0_i32_0 = arith.constant 0 : i32
    %c0_i32_1 = arith.constant 0 : i32
    return %c0_i32, %c0_i32_0 : i32, i32
  }
  func.func @transform_8(%arg0: i32) -> (i32, i32) {
    %c0_i32 = arith.constant 0 : i32
    %c0_i32_0 = arith.constant 0 : i32
    %c0_i32_1 = arith.constant 0 : i32
    return %c0_i32, %c0_i32_0 : i32, i32
  }
  func.func @transform_9(%arg0: i32) -> (i32, i32) {
    %c0_i32 = arith.constant 0 : i32
    %c0_i32_0 = arith.constant 0 : i32
    %c0_i32_1 = arith.constant 0 : i32
    return %c0_i32, %c0_i32_0 : i32, i32
  }
  func.func @transform_10(%arg0: i32) -> (i32, i32) {
    %c0_i32 = arith.constant 0 : i32
    %c0_i32_0 = arith.constant 0 : i32
    %c0_i32_1 = arith.constant 0 : i32
    return %c0_i32, %c0_i32_0 : i32, i32
  }
  func.func @transform_11(%arg0: i32) -> (i32, i32) {
    %c0_i32 = arith.constant 0 : i32
    %c0_i32_0 = arith.constant 0 : i32
    %c0_i32_1 = arith.constant 0 : i32
    return %c0_i32, %c0_i32_0 : i32, i32
  }
  func.func @transform_12(%arg0: i32) -> (i32, i32) {
    %c0_i32 = arith.constant 0 : i32
    %c0_i32_0 = arith.constant 0 : i32
    %c0_i32_1 = arith.constant 0 : i32
    return %c0_i32, %c0_i32_0 : i32, i32
  }
  func.func @transform_13(%arg0: i32) -> (i32, i32) {
    %c0_i32 = arith.constant 0 : i32
    %c0_i32_0 = arith.constant 0 : i32
    return %arg0, %c0_i32 : i32, i32
  }
}

</mosaic_0001>

<llo_original>
// kernel: tpu_custom_call.1
$region0: #{tpu_custom_call.1}
  #allocation0 [shape = 'u32[]', space=smem, size = 0x4, offset = 0x4, fixed_abs, tag = 'smem constant byte address 0x4 - core index']
  #allocation1 [shape = 'u32[144,128]{1,0:T(1,128)}', space=vmem, size = 0x12000, scoped, tag = 'internal scratch']
  #allocation2 [shape = 'f32[1,1]{1,0:T(1,128)S(6)}', space=smem, size = 0x200, scoped, tag = 'scoped memory for tpu_custom_call.1']
  %s0 = inlined_call_operand.hbm [shape: f32[8,64], index: 0, kind: input, shape index: {}]
  %s1 = inlined_call_operand.hbm [shape: f32[8,32], index: 1, kind: input, shape index: {}]
  %s2 = inlined_call_operand.hbm [shape: bf16[64,256], index: 2, kind: input, shape index: {}]
  %s3 = inlined_call_operand.vmem [shape: f32[1,256], index: 3, kind: input, shape index: {}]
  %s4 = inlined_call_operand.hbm [shape: bf16[256,128], index: 4, kind: input, shape index: {}]
  %s5 = inlined_call_operand.vmem [shape: f32[1,128], index: 5, kind: input, shape index: {}]
  %s6 = inlined_call_operand.hbm [shape: bf16[32,256], index: 6, kind: input, shape index: {}]
  %s7 = inlined_call_operand.vmem [shape: f32[1,256], index: 7, kind: input, shape index: {}]
  %s8 = inlined_call_operand.hbm [shape: bf16[256,128], index: 8, kind: input, shape index: {}]
  %s9 = inlined_call_operand.vmem [shape: f32[1,128], index: 9, kind: input, shape index: {}]
  %s10 = inlined_call_operand.vmem [shape: f32[1,128], index: 10, kind: input, shape index: {}]
  %s11 = inlined_call_operand.vmem [shape: f32[1,128], index: 11, kind: input, shape index: {}]
  %s12 = inlined_call_operand.<no memory space> [shape: f32[1,1], index: 12, kind: input, shape index: {}]
  %s13 = inlined_call_operand.vmem [shape: f32[8,1], index: 13, kind: output, shape index: {}]
  %s14 = sld [smem:[#allocation0]]
  $region86: #{tpu_custom_call.1} parent=0
    _
  %s16 = ssub.s32 1, %s14
  %s17 = scalar_select 0, %s16, %s14
  %18 = sst [smem:[#allocation2]] %s12
  $region1: #{tpu_custom_call.1} parent=0
    #allocation3 [shape = 'u8[4096]{0}', space=vmem, size = 0x1000, scoped, tag = 'input window, operand 0, single buffered']
    #allocation4 [shape = 's32[1]{0}', space=sflag, size = 0x4, scoped, tag = 'scoped memory for tpu_custom_call.1']
    #allocation5 [shape = 'u8[4096]{0}', space=vmem, size = 0x1000, scoped, tag = 'input window, operand 1, single buffered']
    #allocation6 [shape = 's32[1]{0}', space=sflag, size = 0x4, scoped, tag = 'scoped memory for tpu_custom_call.1']
    #allocation7 [shape = 'u8[32768]{0}', space=vmem, size = 0x8000, scoped, tag = 'input window, operand 2, single buffered']
    #allocation8 [shape = 'u8[65536]{0}', space=vmem, size = 0x10000, scoped, tag = 'input window, operand 4, single buffered']
    #allocation9 [shape = 's32[1]{0}', space=sflag, size = 0x4, scoped, tag = 'scoped memory for tpu_custom_call.1']
    #allocation10 [shape = 'u8[16384]{0}', space=vmem, size = 0x4000, scoped, tag = 'input window, operand 6, single buffered']
    #allocation11 [shape = 'u8[65536]{0}', space=vmem, size = 0x10000, scoped, tag = 'input window, operand 8, single buffered']
    #allocation12 [shape = 's32[1]{0}', space=sflag, size = 0x4, scoped, tag = 'scoped memory for tpu_custom_call.1']
    %19 = vsyncpa [#allocation4], 0
    %20 = vsyncpa [#allocation6], 0
    %21 = vsyncpa [#allocation9], 0
    %22 = vsyncpa [#allocation12], 0
    // Predicated region
    $region2: #{tpu_custom_call.1} parent=1 // pred_check
      _
    $region3: #{tpu_custom_call.1} parent=1 // pred_check_branch
      %24 = sbr.rel (0) target = $region5
    $region4: #{tpu_custom_call.1} parent=1 // pred_region
      %s26 = ssub.s32 128, 128
      %27 = vsyncadd [#allocation4], %s26
      %s29 = sshll.u32 [#allocation3], 4
      %s30 = int_to_ptr.vmem [resolvable:$true] %s29
      %32 = dma.hbm_to_vmem [thread:$0]  %s0, 128, %s30, [#allocation4]
    $region5: #{tpu_custom_call.1} parent=1 // pred_fallthru
      _
    // Predicated region
    $region6: #{tpu_custom_call.1} parent=1 // pred_check
      _
    $region7: #{tpu_custom_call.1} parent=1 // pred_check_branch
      %34 = sbr.rel (0) target = $region9
    $region8: #{tpu_custom_call.1} parent=1 // pred_region
      %s36 = ssub.s32 128, 128
      %37 = vsyncadd [#allocation6], %s36
      %s39 = sshll.u32 [#allocation5], 4
      %s40 = int_to_ptr.vmem [resolvable:$true] %s39
      %42 = dma.hbm_to_vmem [thread:$0]  %s1, 128, %s40, [#allocation6]
    $region9: #{tpu_custom_call.1} parent=1 // pred_fallthru
      _
    // Predicated region
    $region10: #{tpu_custom_call.1} parent=1 // pred_check
      _
    $region11: #{tpu_custom_call.1} parent=1 // pred_check_branch
      %44 = sbr.rel (0) target = $region13
    $region12: #{tpu_custom_call.1} parent=1 // pred_region
      %s46 = ssub.s32 1024, 1024
      %47 = vsyncadd [#allocation6], %s46
      %s48 = sshll.u32 [#allocation7], 4
      %s49 = int_to_ptr.vmem [resolvable:$true] %s48
      %54 = dma.hbm_to_vmem [thread:$0]  %s2, 1024, %s49, [#allocation6], 128, 128, 8
    $region13: #{tpu_custom_call.1} parent=1 // pred_fallthru
      _
    // Predicated region
    $region14: #{tpu_custom_call.1} parent=1 // pred_check
      _
    $region15: #{tpu_custom_call.1} parent=1 // pred_check_branch
      %56 = sbr.rel (0) target = $region17
    $region16: #{tpu_custom_call.1} parent=1 // pred_region
      _
    $region17: #{tpu_custom_call.1} parent=1 // pred_fallthru
      _
    // Predicated region
    $region18: #{tpu_custom_call.1} parent=1 // pred_check
      _
    $region19: #{tpu_custom_call.1} parent=1 // pred_check_branch
      %58 = sbr.rel (0) target = $region21
    $region20: #{tpu_custom_call.1} parent=1 // pred_region
      %s60 = ssub.s32 2048, 2048
      %61 = vsyncadd [#allocation9], %s60
      %s62 = sshll.u32 [#allocation8], 4
      %s63 = int_to_ptr.vmem [resolvable:$true] %s62
      %68 = dma.hbm_to_vmem [thread:$0]  %s4, 2048, %s63, [#allocation9], 64, 64, 4
    $region21: #{tpu_custom_call.1} parent=1 // pred_fallthru
      _
    // Predicated region
    $region22: #{tpu_custom_call.1} parent=1 // pred_check
      _
    $region23: #{tpu_custom_call.1} parent=1 // pred_check_branch
      %70 = sbr.rel (0) target = $region25
    $region24: #{tpu_custom_call.1} parent=1 // pred_region
      _
    $region25: #{tpu_custom_call.1} parent=1 // pred_fallthru
      _
    // Predicated region
    $region26: #{tpu_custom_call.1} parent=1 // pred_check
      _
    $region27: #{tpu_custom_call.1} parent=1 // pred_check_branch
      %72 = sbr.rel (0) target = $region29
    $region28: #{tpu_custom_call.1} parent=1 // pred_region
      %s74 = ssub.s32 512, 512
      %75 = vsyncadd [#allocation9], %s74
      %s76 = sshll.u32 [#allocation10], 4
      %s77 = int_to_ptr.vmem [resolvable:$true] %s76
      %82 = dma.hbm_to_vmem [thread:$0]  %s6, 512, %s77, [#allocation9], 128, 128, 8
    $region29: #{tpu_custom_call.1} parent=1 // pred_fallthru
      _
    // Predicated region
    $region30: #{tpu_custom_call.1} parent=1 // pred_check
      _
    $region31: #{tpu_custom_call.1} parent=1 // pred_check_branch
      %84 = sbr.rel (0) target = $region33
    $region32: #{tpu_custom_call.1} parent=1 // pred_region
      _
    $region33: #{tpu_custom_call.1} parent=1 // pred_fallthru
      _
    // Predicated region
    $region34: #{tpu_custom_call.1} parent=1 // pred_check
      _
    $region35: #{tpu_custom_call.1} parent=1 // pred_check_branch
      %86 = sbr.rel (0) target = $region37
    $region36: #{tpu_custom_call.1} parent=1 // pred_region
      %s88 = ssub.s32 2048, 2048
      %89 = vsyncadd [#allocation12], %s88
      %s90 = sshll.u32 [#allocation11], 4
      %s91 = int_to_ptr.vmem [resolvable:$true] %s90
      %96 = dma.hbm_to_vmem [thread:$0]  %s8, 2048, %s91, [#allocation12], 64, 64, 4
    $region37: #{tpu_custom_call.1} parent=1 // pred_fallthru
      _
    // Predicated region
    $region38: #{tpu_custom_call.1} parent=1 // pred_check
      _
    $region39: #{tpu_custom_call.1} parent=1 // pred_check_branch
      %98 = sbr.rel (0) target = $region41
    $region40: #{tpu_custom_call.1} parent=1 // pred_region
      _
    $region41: #{tpu_custom_call.1} parent=1 // pred_fallthru
      _
    // Predicated region
    $region42: #{tpu_custom_call.1} parent=1 // pred_check
      _
    $region43: #{tpu_custom_call.1} parent=1 // pred_check_branch
      %100 = sbr.rel (0) target = $region45
    $region44: #{tpu_custom_call.1} parent=1 // pred_region
      _
    $region45: #{tpu_custom_call.1} parent=1 // pred_fallthru
      _
    // Predicated region
    $region46: #{tpu_custom_call.1} parent=1 // pred_check
      _
    $region47: #{tpu_custom_call.1} parent=1 // pred_check_branch
      %102 = sbr.rel (0) target = $region49
    $region48: #{tpu_custom_call.1} parent=1 // pred_region
      _
    $region49: #{tpu_custom_call.1} parent=1 // pred_fallthru
      _
    // Predicated region
    $region50: #{tpu_custom_call.1} parent=1 // pred_check
      _
    $region51: #{tpu_custom_call.1} parent=1 // pred_check_branch
      %104 = sbr.rel (0) target = $region53
    $region52: #{tpu_custom_call.1} parent=1 // pred_region
      _
    $region53: #{tpu_custom_call.1} parent=1 // pred_fallthru
      _
    // Predicated region
    $region54: #{tpu_custom_call.1} parent=1 // pred_check
      _
    $region55: #{tpu_custom_call.1} parent=1 // pred_check_branch
      %106 = sbr.rel (0) target = $region57
    $region56: #{tpu_custom_call.1} parent=1 // pred_region
      %107 = dma.done [#allocation4], 128
    $region57: #{tpu_custom_call.1} parent=1 // pred_fallthru
      _
    // Predicated region
    $region58: #{tpu_custom_call.1} parent=1 // pred_check
      _
    $region59: #{tpu_custom_call.1} parent=1 // pred_check_branch
      %109 = sbr.rel (0) target = $region61
    $region60: #{tpu_custom_call.1} parent=1 // pred_region
      %110 = dma.done [#allocation6], 128
    $region61: #{tpu_custom_call.1} parent=1 // pred_fallthru
      _
    // Predicated region
    $region62: #{tpu_custom_call.1} parent=1 // pred_check
      _
    $region63: #{tpu_custom_call.1} parent=1 // pred_check_branch
      %112 = sbr.rel (0) target = $region65
    $region64: #{tpu_custom_call.1} parent=1 // pred_region
      %113 = dma.done [#allocation6], 1024
    $region65: #{tpu_custom_call.1} parent=1 // pred_fallthru
      _
    // Predicated region
    $region66: #{tpu_custom_call.1} parent=1 // pred_check
      _
    $region67: #{tpu_custom_call.1} parent=1 // pred_check_branch
      %115 = sbr.rel (0) target = $region69
    $region68: #{tpu_custom_call.1} parent=1 // pred_region
      %116 = dma.done [#allocation9], 2048
    $region69: #{tpu_custom_call.1} parent=1 // pred_fallthru
      _
    // Predicated region
    $region70: #{tpu_custom_call.1} parent=1 // pred_check
      _
    $region71: #{tpu_custom_call.1} parent=1 // pred_check_branch
      %118 = sbr.rel (0) target = $region73
    $region72: #{tpu_custom_call.1} parent=1 // pred_region
      %119 = dma.done [#allocation9], 512
    $region73: #{tpu_custom_call.1} parent=1 // pred_fallthru
      _
    // Predicated region
    $region74: #{tpu_custom_call.1} parent=1 // pred_check
      _
    $region75: #{tpu_custom_call.1} parent=1 // pred_check_branch
      %121 = sbr.rel (0) target = $region77
    $region76: #{tpu_custom_call.1} parent=1 // pred_region
      %122 = dma.done [#allocation12], 2048
    $region77: #{tpu_custom_call.1} parent=1 // pred_fallthru
      _
    %v124 = vld [vmem:[#allocation3] sm:$0xff]
    %v125 = vpack.c.bf16 %v124, %v124
    %v126 = vld [vmem:[#allocation7] sm:$0xff]
    %v127 = vld [vmem:[#allocation7 + $0x8] sm:$0xff]
    %v128 = vld [vmem:[#allocation7 + $0x10] sm:$0xff]
    %v129 = vld [vmem:[#allocation7 + $0x18] sm:$0xff]
    %v130 = vld [vmem:[#allocation7 + $0x20] sm:$0xff]
    %v131 = vld [vmem:[#allocation7 + $0x28] sm:$0xff]
    %v132 = vld [vmem:[#allocation7 + $0x30] sm:$0xff]
    %v133 = vld [vmem:[#allocation7 + $0x38] sm:$0xff]
    %v134 = vld [vmem:[%s3] sm:$0x3]
    %v136 = vlaneseq
    %v137 = vshrl.u32 %v136, 7
    %v138 = vsub.s32 0, %v137
    %v139 = vrot.slane %v134, %v138
    %v140 = vlaneseq
    %v141 = vshrl.u32 %v140, 7
    %v142 = vsub.s32 1, %v141
    %v143 = vrot.slane %v134, %v142
    %v154 = vunpack.c.l.b16 %v126
    %v155 = vunpack.c.h.b16 %v126
    %v156 = vunpack.c.l.b16 %v127
    %v157 = vunpack.c.h.b16 %v127
    %v158 = vunpack.c.l.b16 %v128
    %v159 = vunpack.c.h.b16 %v128
    %v160 = vunpack.c.l.b16 %v129
    %v161 = vunpack.c.h.b16 %v129
    %v162 = vunpack.c.l.b16 %v130
    %v163 = vunpack.c.h.b16 %v130
    %v164 = vunpack.c.l.b16 %v131
    %v165 = vunpack.c.h.b16 %v131
    %v166 = vunpack.c.l.b16 %v132
    %v167 = vunpack.c.h.b16 %v132
    %v168 = vunpack.c.l.b16 %v133
    %v169 = vunpack.c.h.b16 %v133
    %v170 = vpack.c.b16 %v156, %v154
    %v171 = vpack.c.b16 %v157, %v155
    %v172 = vpack.c.b16 %v160, %v158
    %v173 = vpack.c.b16 %v161, %v159
    %v174 = vpack.c.b16 %v164, %v162
    %v175 = vpack.c.b16 %v165, %v163
    %v176 = vpack.c.b16 %v168, %v166
    %v177 = vpack.c.b16 %v169, %v167
    %vm186 = vcmask 523264
    %v188 = vsel %vm186, %v125, 0
    %190 = vmatprep.subr.bf16.mxu0 0
    %191 = vmatpush1.bf16.msra.mxu0 0
    %192 = vmatprep.subr.bf16.mxu0 0
    %193 = vmatpush1.bf16.msra.mxu0 0
    %194 = vmatprep.subr.bf16.mxu0 0
    %195 = vmatpush1.bf16.msra.mxu0 0
    %196 = vmatprep.subr.bf16.mxu0 0
    %197 = vmatpush1.bf16.msra.mxu0 0
    %198 = vmatprep.subr.bf16.mxu0 %v177
    %199 = vmatpush1.bf16.msra.mxu0 %v176
    %200 = vmatprep.subr.bf16.mxu0 %v175
    %201 = vmatpush1.bf16.msra.mxu0 %v174
    %202 = vmatprep.subr.bf16.mxu0 %v173
    %203 = vmatpush1.bf16.msra.mxu0 %v172
    %204 = vmatprep.subr.bf16.mxu0 %v171
    %205 = vmatpush1.bf16.msra.mxu0 %v170
    %206 = vmatprep.subr.bf16.mxu0 0
    %207 = vmatpush2.bf16.msra.mxu0 0
    %208 = vmatprep.subr.bf16.mxu0 0
    %209 = vmatpush2.bf16.msra.mxu0 0
    %210 = vmatprep.subr.bf16.mxu0 0
    %211 = vmatpush2.bf16.msra.mxu0 0
    %212 = vmatprep.subr.bf16.mxu0 0
    %213 = vmatpush2.bf16.msra.mxu0 0
    %214 = vmatprep.subr.bf16.mxu0 0
    %215 = vmatpush2.bf16.msra.mxu0 0
    %216 = vmatprep.subr.bf16.mxu0 0
    %217 = vmatpush2.bf16.msra.mxu0 0
    %218 = vmatprep.subr.bf16.mxu0 0
    %219 = vmatpush2.bf16.msra.mxu0 0
    %220 = vmatprep.subr.bf16.mxu0 0
    %221 = vmatpush2.bf16.msra.mxu0 0
    %222 = vmatprep.mubr.bf16.mxu0 0
    %223 = vmatmul.mubr.bf16.gmra.mxu0 %v188
    %v224 = vpop.f32.mrf.mxu0
    %v225 = vadd.f32 %v139, %v224
    %v226 = vpop.f32.mrf.mxu0
    %v227 = vadd.f32 %v143, %v226
    %v228 = vpop.f32.mrf.mxu0
    %v229 = vpop.f32.mrf.mxu0
    %230 = vdwg.mxu0
    %v231 = vmax.f32 %v225, 0.0
    %v232 = vmax.f32 %v227, 0.0
    %v233 = vpack.c.bf16 %v231, %v231
    %v234 = vpack.c.bf16 %v232, %v232
    %v235 = vld [vmem:[#allocation8] sm:$0xf]
    %v236 = vld [vmem:[#allocation8 + $0x4] sm:$0xf]
    %v237 = vld [vmem:[#allocation8 + $0x8] sm:$0xf]
    %v238 = vld [vmem:[#allocation8 + $0xc] sm:$0xf]
    %v239 = vld [vmem:[#allocation8 + $0x10] sm:$0xf]
    %v240 = vld [vmem:[#allocation8 + $0x14] sm:$0xf]
    %v241 = vld [vmem:[#allocation8 + $0x18] sm:$0xf]
    %v242 = vld [vmem:[#allocation8 + $0x1c] sm:$0xf]
    %v243 = vld [vmem:[#allocation8 + $0x20] sm:$0xf]
    %v244 = vld [vmem:[#allocation8 + $0x24] sm:$0xf]
    %v245 = vld [vmem:[#allocation8 + $0x28] sm:$0xf]
    %v246 = vld [vmem:[#allocation8 + $0x2c] sm:$0xf]
    %v247 = vld [vmem:[#allocation8 + $0x30] sm:$0xf]
    %v248 = vld [vmem:[#allocation8 + $0x34] sm:$0xf]
    %v249 = vld [vmem:[#allocation8 + $0x38] sm:$0xf]
    %v250 = vld [vmem:[#allocation8 + $0x3c] sm:$0xf]
    %v251 = vld [vmem:[#allocation8 + $0x40] sm:$0xf]
    %v252 = vld [vmem:[#allocation8 + $0x44] sm:$0xf]
    %v253 = vld [vmem:[#allocation8 + $0x48] sm:$0xf]
    %v254 = vld [vmem:[#allocation8 + $0x4c] sm:$0xf]
    %v255 = vld [vmem:[#allocation8 + $0x50] sm:$0xf]
    %v256 = vld [vmem:[#allocation8 + $0x54] sm:$0xf]
    %v257 = vld [vmem:[#allocation8 + $0x58] sm:$0xf]
    %v258 = vld [vmem:[#allocation8 + $0x5c] sm:$0xf]
    %v259 = vld [vmem:[#allocation8 + $0x60] sm:$0xf]
    %v260 = vld [vmem:[#allocation8 + $0x64] sm:$0xf]
    %v261 = vld [vmem:[#allocation8 + $0x68] sm:$0xf]
    %v262 = vld [vmem:[#allocation8 + $0x6c] sm:$0xf]
    %v263 = vld [vmem:[#allocation8 + $0x70] sm:$0xf]
    %v264 = vld [vmem:[#allocation8 + $0x74] sm:$0xf]
    %v265 = vld [vmem:[#allocation8 + $0x78] sm:$0xf]
    %v266 = vld [vmem:[#allocation8 + $0x7c] sm:$0xf]
    %v267 = vld [vmem:[%s5] sm:$0x1]
    %v269 = vlaneseq
    %v270 = vshrl.u32 %v269, 7
    %v271 = vsub.s32 0, %v270
    %v272 = vrot.slane %v267, %v271
    %v306 = vunpack.c.l.b16 %v235
    %v307 = vunpack.c.l.b16 %v236
    %v308 = vunpack.c.l.b16 %v237
    %v309 = vunpack.c.l.b16 %v238
    %v310 = vunpack.c.l.b16 %v239
    %v311 = vunpack.c.l.b16 %v240
    %v312 = vunpack.c.l.b16 %v241
    %v313 = vunpack.c.l.b16 %v242
    %v314 = vunpack.c.l.b16 %v243
    %v315 = vunpack.c.l.b16 %v244
    %v316 = vunpack.c.l.b16 %v245
    %v317 = vunpack.c.l.b16 %v246
    %v318 = vunpack.c.l.b16 %v247
    %v319 = vunpack.c.l.b16 %v248
    %v320 = vunpack.c.l.b16 %v249
    %v321 = vunpack.c.l.b16 %v250
    %v322 = vunpack.c.l.b16 %v251
    %v323 = vunpack.c.l.b16 %v252
    %v324 = vunpack.c.l.b16 %v253
    %v325 = vunpack.c.l.b16 %v254
    %v326 = vunpack.c.l.b16 %v255
    %v327 = vunpack.c.l.b16 %v256
    %v328 = vunpack.c.l.b16 %v257
    %v329 = vunpack.c.l.b16 %v258
    %v330 = vunpack.c.l.b16 %v259
    %v331 = vunpack.c.l.b16 %v260
    %v332 = vunpack.c.l.b16 %v261
    %v333 = vunpack.c.l.b16 %v262
    %v334 = vunpack.c.l.b16 %v263
    %v335 = vunpack.c.l.b16 %v264
    %v336 = vunpack.c.l.b16 %v265
    %v337 = vunpack.c.l.b16 %v266
    %v338 = vpack.c.b16 %v307, %v306
    %v339 = vpack.c.b16 %v309, %v308
    %v340 = vpack.c.b16 %v311, %v310
    %v341 = vpack.c.b16 %v313, %v312
    %v342 = vpack.c.b16 %v315, %v314
    %v343 = vpack.c.b16 %v317, %v316
    %v344 = vpack.c.b16 %v319, %v318
    %v345 = vpack.c.b16 %v321, %v320
    %v346 = vpack.c.b16 %v323, %v322
    %v347 = vpack.c.b16 %v325, %v324
    %v348 = vpack.c.b16 %v327, %v326
    %v349 = vpack.c.b16 %v329, %v328
    %v350 = vpack.c.b16 %v331, %v330
    %v351 = vpack.c.b16 %v333, %v332
    %v352 = vpack.c.b16 %v335, %v334
    %v353 = vpack.c.b16 %v337, %v336
    %370 = vmatprep.subr.bf16.mxu0 0
    %371 = vmatpush1.bf16.msra.mxu0 %v345
    %372 = vmatprep.subr.bf16.mxu0 0
    %373 = vmatpush1.bf16.msra.mxu0 %v344
    %374 = vmatprep.subr.bf16.mxu0 0
    %375 = vmatpush1.bf16.msra.mxu0 %v343
    %376 = vmatprep.subr.bf16.mxu0 0
    %377 = vmatpush1.bf16.msra.mxu0 %v342
    %378 = vmatprep.subr.bf16.mxu0 0
    %379 = vmatpush1.bf16.msra.mxu0 %v341
    %380 = vmatprep.subr.bf16.mxu0 0
    %381 = vmatpush1.bf16.msra.mxu0 %v340
    %382 = vmatprep.subr.bf16.mxu0 0
    %383 = vmatpush1.bf16.msra.mxu0 %v339
    %384 = vmatprep.subr.bf16.mxu0 0
    %385 = vmatpush1.bf16.msra.mxu0 %v338
    %386 = vmatprep.subr.bf16.mxu0 0
    %387 = vmatpush2.bf16.msra.mxu0 %v353
    %388 = vmatprep.subr.bf16.mxu0 0
    %389 = vmatpush2.bf16.msra.mxu0 %v352
    %390 = vmatprep.subr.bf16.mxu0 0
    %391 = vmatpush2.bf16.msra.mxu0 %v351
    %392 = vmatprep.subr.bf16.mxu0 0
    %393 = vmatpush2.bf16.msra.mxu0 %v350
    %394 = vmatprep.subr.bf16.mxu0 0
    %395 = vmatpush2.bf16.msra.mxu0 %v349
    %396 = vmatprep.subr.bf16.mxu0 0
    %397 = vmatpush2.bf16.msra.mxu0 %v348
    %398 = vmatprep.subr.bf16.mxu0 0
    %399 = vmatpush2.bf16.msra.mxu0 %v347
    %400 = vmatprep.subr.bf16.mxu0 0
    %401 = vmatpush2.bf16.msra.mxu0 %v346
    %402 = vmatprep.mubr.bf16.mxu0 %v234
    %403 = vmatmul.mubr.bf16.gmra.mxu0 %v233
    %v404 = vpop.f32.mrf.mxu0
    %v405 = vadd.f32 %v272, %v404
    %v406 = vpop.f32.mrf.mxu0
    %v407 = vpop.f32.mrf.mxu0
    %v408 = vpop.f32.mrf.mxu0
    %409 = vdwg.mxu0
    %v410 = vmax.f32 %v405, 0.0
    %v411 = vld [vmem:[%s10] sm:$0x1]
    %v413 = vlaneseq
    %v414 = vshrl.u32 %v413, 7
    %v415 = vsub.s32 0, %v414
    %v416 = vrot.slane %v411, %v415
    %v418 = vmul.f32 %v410, %v416
    %419 = vadd.xlane.f32.xlu0 %v418
    %v420 = vpop.xlane.xlu0 %419
    %v421 = vld [vmem:[#allocation5] sm:$0xff]
    %v422 = vpack.c.bf16 %v421, %v421
    %v423 = vld [vmem:[#allocation10] sm:$0xff]
    %v424 = vld [vmem:[#allocation10 + $0x8] sm:$0xff]
    %v425 = vld [vmem:[#allocation10 + $0x10] sm:$0xff]
    %v426 = vld [vmem:[#allocation10 + $0x18] sm:$0xff]
    %v427 = vld [vmem:[%s7] sm:$0x3]
    %v429 = vlaneseq
    %v430 = vshrl.u32 %v429, 7
    %v431 = vsub.s32 0, %v430
    %v432 = vrot.slane %v427, %v431
    %v433 = vlaneseq
    %v434 = vshrl.u32 %v433, 7
    %v435 = vsub.s32 1, %v434
    %v436 = vrot.slane %v427, %v435
    %v443 = vunpack.c.l.b16 %v423
    %v444 = vunpack.c.h.b16 %v423
    %v445 = vunpack.c.l.b16 %v424
    %v446 = vunpack.c.h.b16 %v424
    %v447 = vunpack.c.l.b16 %v425
    %v448 = vunpack.c.h.b16 %v425
    %v449 = vunpack.c.l.b16 %v426
    %v450 = vunpack.c.h.b16 %v426
    %v451 = vpack.c.b16 %v445, %v443
    %v452 = vpack.c.b16 %v446, %v444
    %v453 = vpack.c.b16 %v449, %v447
    %v454 = vpack.c.b16 %v450, %v448
    %vm459 = vcmask 261120
    %v461 = vsel %vm459, %v422, 0
    %463 = vmatprep.subr.bf16.mxu0 0
    %464 = vmatpush1.bf16.msra.mxu0 0
    %465 = vmatprep.subr.bf16.mxu0 0
    %466 = vmatpush1.bf16.msra.mxu0 0
    %467 = vmatprep.subr.bf16.mxu0 0
    %468 = vmatpush1.bf16.msra.mxu0 0
    %469 = vmatprep.subr.bf16.mxu0 0
    %470 = vmatpush1.bf16.msra.mxu0 0
    %471 = vmatprep.subr.bf16.mxu0 0
    %472 = vmatpush1.bf16.msra.mxu0 0
    %473 = vmatprep.subr.bf16.mxu0 0
    %474 = vmatpush1.bf16.msra.mxu0 0
    %475 = vmatprep.subr.bf16.mxu0 %v454
    %476 = vmatpush1.bf16.msra.mxu0 %v453
    %477 = vmatprep.subr.bf16.mxu0 %v452
    %478 = vmatpush1.bf16.msra.mxu0 %v451
    %479 = vmatprep.subr.bf16.mxu0 0
    %480 = vmatpush2.bf16.msra.mxu0 0
    %481 = vmatprep.subr.bf16.mxu0 0
    %482 = vmatpush2.bf16.msra.mxu0 0
    %483 = vmatprep.subr.bf16.mxu0 0
    %484 = vmatpush2.bf16.msra.mxu0 0
    %485 = vmatprep.subr.bf16.mxu0 0
    %486 = vmatpush2.bf16.msra.mxu0 0
    %487 = vmatprep.subr.bf16.mxu0 0
    %488 = vmatpush2.bf16.msra.mxu0 0
    %489 = vmatprep.subr.bf16.mxu0 0
    %490 = vmatpush2.bf16.msra.mxu0 0
    %491 = vmatprep.subr.bf16.mxu0 0
    %492 = vmatpush2.bf16.msra.mxu0 0
    %493 = vmatprep.subr.bf16.mxu0 0
    %494 = vmatpush2.bf16.msra.mxu0 0
    %495 = vmatprep.mubr.bf16.mxu0 0
    %496 = vmatmul.mubr.bf16.gmra.mxu0 %v461
    %v497 = vpop.f32.mrf.mxu0
    %v498 = vadd.f32 %v432, %v497
    %v499 = vpop.f32.mrf.mxu0
    %v500 = vadd.f32 %v436, %v499
    %v501 = vpop.f32.mrf.mxu0
    %v502 = vpop.f32.mrf.mxu0
    %503 = vdwg.mxu0
    %v504 = vmax.f32 %v498, 0.0
    %v505 = vmax.f32 %v500, 0.0
    %v506 = vpack.c.bf16 %v504, %v504
    %v507 = vpack.c.bf16 %v505, %v505
    %v508 = vld [vmem:[#allocation11] sm:$0xf]
    %v509 = vld [vmem:[#allocation11 + $0x4] sm:$0xf]
    %v510 = vld [vmem:[#allocation11 + $0x8] sm:$0xf]
    %v511 = vld [vmem:[#allocation11 + $0xc] sm:$0xf]
    %v512 = vld [vmem:[#allocation11 + $0x10] sm:$0xf]
    %v513 = vld [vmem:[#allocation11 + $0x14] sm:$0xf]
    %v514 = vld [vmem:[#allocation11 + $0x18] sm:$0xf]
    %v515 = vld [vmem:[#allocation11 + $0x1c] sm:$0xf]
    %v516 = vld [vmem:[#allocation11 + $0x20] sm:$0xf]
    %v517 = vld [vmem:[#allocation11 + $0x24] sm:$0xf]
    %v518 = vld [vmem:[#allocation11 + $0x28] sm:$0xf]
    %v519 = vld [vmem:[#allocation11 + $0x2c] sm:$0xf]
    %v520 = vld [vmem:[#allocation11 + $0x30] sm:$0xf]
    %v521 = vld [vmem:[#allocation11 + $0x34] sm:$0xf]
    %v522 = vld [vmem:[#allocation11 + $0x38] sm:$0xf]
    %v523 = vld [vmem:[#allocation11 + $0x3c] sm:$0xf]
    %v524 = vld [vmem:[#allocation11 + $0x40] sm:$0xf]
    %v525 = vld [vmem:[#allocation11 + $0x44] sm:$0xf]
    %v526 = vld [vmem:[#allocation11 + $0x48] sm:$0xf]
    %v527 = vld [vmem:[#allocation11 + $0x4c] sm:$0xf]
    %v528 = vld [vmem:[#allocation11 + $0x50] sm:$0xf]
    %v529 = vld [vmem:[#allocation11 + $0x54] sm:$0xf]
    %v530 = vld [vmem:[#allocation11 + $0x58] sm:$0xf]
    %v531 = vld [vmem:[#allocation11 + $0x5c] sm:$0xf]
    %v532 = vld [vmem:[#allocation11 + $0x60] sm:$0xf]
    %v533 = vld [vmem:[#allocation11 + $0x64] sm:$0xf]
    %v534 = vld [vmem:[#allocation11 + $0x68] sm:$0xf]
    %v535 = vld [vmem:[#allocation11 + $0x6c] sm:$0xf]
    %v536 = vld [vmem:[#allocation11 + $0x70] sm:$0xf]
    %v537 = vld [vmem:[#allocation11 + $0x74] sm:$0xf]
    %v538 = vld [vmem:[#allocation11 + $0x78] sm:$0xf]
    %v539 = vld [vmem:[#allocation11 + $0x7c] sm:$0xf]
    %v540 = vld [vmem:[%s9] sm:$0x1]
    %v542 = vlaneseq
    %v543 = vshrl.u32 %v542, 7
    %v544 = vsub.s32 0, %v543
    %v545 = vrot.slane %v540, %v544
    %v579 = vunpack.c.l.b16 %v508
    %v580 = vunpack.c.l.b16 %v509
    %v581 = vunpack.c.l.b16 %v510
    %v582 = vunpack.c.l.b16 %v511
    %v583 = vunpack.c.l.b16 %v512
    %v584 = vunpack.c.l.b16 %v513
    %v585 = vunpack.c.l.b16 %v514
    %v586 = vunpack.c.l.b16 %v515
    %v587 = vunpack.c.l.b16 %v516
    %v588 = vunpack.c.l.b16 %v517
    %v589 = vunpack.c.l.b16 %v518
    %v590 = vunpack.c.l.b16 %v519
    %v591 = vunpack.c.l.b16 %v520
    %v592 = vunpack.c.l.b16 %v521
    %v593 = vunpack.c.l.b16 %v522
    %v594 = vunpack.c.l.b16 %v523
    %v595 = vunpack.c.l.b16 %v524
    %v596 = vunpack.c.l.b16 %v525
    %v597 = vunpack.c.l.b16 %v526
    %v598 = vunpack.c.l.b16 %v527
    %v599 = vunpack.c.l.b16 %v528
    %v600 = vunpack.c.l.b16 %v529
    %v601 = vunpack.c.l.b16 %v530
    %v602 = vunpack.c.l.b16 %v531
    %v603 = vunpack.c.l.b16 %v532
    %v604 = vunpack.c.l.b16 %v533
    %v605 = vunpack.c.l.b16 %v534
    %v606 = vunpack.c.l.b16 %v535
    %v607 = vunpack.c.l.b16 %v536
    %v608 = vunpack.c.l.b16 %v537
    %v609 = vunpack.c.l.b16 %v538
    %v610 = vunpack.c.l.b16 %v539
    %v611 = vpack.c.b16 %v580, %v579
    %v612 = vpack.c.b16 %v582, %v581
    %v613 = vpack.c.b16 %v584, %v583
    %v614 = vpack.c.b16 %v586, %v585
    %v615 = vpack.c.b16 %v588, %v587
    %v616 = vpack.c.b16 %v590, %v589
    %v617 = vpack.c.b16 %v592, %v591
    %v618 = vpack.c.b16 %v594, %v593
    %v619 = vpack.c.b16 %v596, %v595
    %v620 = vpack.c.b16 %v598, %v597
    %v621 = vpack.c.b16 %v600, %v599
    %v622 = vpack.c.b16 %v602, %v601
    %v623 = vpack.c.b16 %v604, %v603
    %v624 = vpack.c.b16 %v606, %v605
    %v625 = vpack.c.b16 %v608, %v607
    %v626 = vpack.c.b16 %v610, %v609
    %643 = vmatprep.subr.bf16.mxu0 0
    %644 = vmatpush1.bf16.msra.mxu0 %v618
    %645 = vmatprep.subr.bf16.mxu0 0
    %646 = vmatpush1.bf16.msra.mxu0 %v617
    %647 = vmatprep.subr.bf16.mxu0 0
    %648 = vmatpush1.bf16.msra.mxu0 %v616
    %649 = vmatprep.subr.bf16.mxu0 0
    %650 = vmatpush1.bf16.msra.mxu0 %v615
    %651 = vmatprep.subr.bf16.mxu0 0
    %652 = vmatpush1.bf16.msra.mxu0 %v614
    %653 = vmatprep.subr.bf16.mxu0 0
    %654 = vmatpush1.bf16.msra.mxu0 %v613
    %655 = vmatprep.subr.bf16.mxu0 0
    %656 = vmatpush1.bf16.msra.mxu0 %v612
    %657 = vmatprep.subr.bf16.mxu0 0
    %658 = vmatpush1.bf16.msra.mxu0 %v611
    %659 = vmatprep.subr.bf16.mxu0 0
    %660 = vmatpush2.bf16.msra.mxu0 %v626
    %661 = vmatprep.subr.bf16.mxu0 0
    %662 = vmatpush2.bf16.msra.mxu0 %v625
    %663 = vmatprep.subr.bf16.mxu0 0
    %664 = vmatpush2.bf16.msra.mxu0 %v624
    %665 = vmatprep.subr.bf16.mxu0 0
    %666 = vmatpush2.bf16.msra.mxu0 %v623
    %667 = vmatprep.subr.bf16.mxu0 0
    %668 = vmatpush2.bf16.msra.mxu0 %v622
    %669 = vmatprep.subr.bf16.mxu0 0
    %670 = vmatpush2.bf16.msra.mxu0 %v621
    %671 = vmatprep.subr.bf16.mxu0 0
    %672 = vmatpush2.bf16.msra.mxu0 %v620
    %673 = vmatprep.subr.bf16.mxu0 0
    %674 = vmatpush2.bf16.msra.mxu0 %v619
    %675 = vmatprep.mubr.bf16.mxu0 %v507
    %676 = vmatmul.mubr.bf16.gmra.mxu0 %v506
    %v677 = vpop.f32.mrf.mxu0
    %v678 = vadd.f32 %v545, %v677
    %v679 = vpop.f32.mrf.mxu0
    %v680 = vpop.f32.mrf.mxu0
    %v681 = vpop.f32.mrf.mxu0
    %682 = vdwg.mxu0
    %v683 = vmax.f32 %v678, 0.0
    %v684 = vld [vmem:[%s11] sm:$0x1]
    %v686 = vlaneseq
    %v687 = vshrl.u32 %v686, 7
    %v688 = vsub.s32 0, %v687
    %v689 = vrot.slane %v684, %v688
    %v691 = vmul.f32 %v683, %v689
    %692 = vadd.xlane.f32.xlu0 %v691
    %v693 = vpop.xlane.xlu0 %692
    %v694 = vadd.f32 %v420, %v693
    %s695 = sld [smem:[#allocation2]]
    %v696 = vstv %s695
    %v697 = vadd.f32 %v694, %v696
    %vm698 = vcmask 7168
    %699 = vst.msk [vmem:[%s13] sm:$0xff] %vm698, %v697
    // Predicated region
    $region78: #{tpu_custom_call.1} parent=1 // pred_check
      _
    $region79: #{tpu_custom_call.1} parent=1 // pred_check_branch
      %701 = sbr.rel (0) target = $region81
    $region80: #{tpu_custom_call.1} parent=1 // pred_region
      _
    $region81: #{tpu_custom_call.1} parent=1 // pred_fallthru
      _
    // Predicated region
    $region82: #{tpu_custom_call.1} parent=1 // pred_check
      _
    $region83: #{tpu_custom_call.1} parent=1 // pred_check_branch
      %703 = sbr.rel (0) target = $region85
    $region84: #{tpu_custom_call.1} parent=1 // pred_region
      _
    $region85: #{tpu_custom_call.1} parent=1 // pred_fallthru
      _
    %704 = vsyncpa [#allocation4], 1
    %705 = vsyncpa [#allocation6], 1
    %706 = vsyncpa [#allocation9], 1
    %707 = vsyncpa [#allocation12], 1

</llo_original>
